<compile_context>
chip_gen: v7x
topology: tpu7x:2x2x1
jax: 0.10.0
libtpu: 0.0.40
codegen_flags: <defaults>
</compile_context>

<pallas_src>
import numpy as np
import jax
import jax.numpy as jnp
from jax.experimental import pallas as pl
from jax.experimental.pallas import tpu as pltpu


def _round_up(v, m):
    return (v + m - 1) // m * m


def pack_lstm_params(w, b, input_size, hidden_size, lane=128):
    """One-time repack of the PyTorch Linear parameters for the fused kernel.

    w: (4H, I+H)  nn.Linear weight, gate order [in, cell, forget, out].
    b: (4H,)      nn.Linear bias.

    Returns:
      wc: (Kp, 4*Hp) fused weight.  Rows 0..K-1 are the (transposed) weight,
          row K is the bias (forgetgate "+1.0" folded in), remaining rows are
          zero padding.  Gates are permuted to [in, forget, out, cell] and
          each gate is zero-padded to Hp (multiple of 128 lanes).
    """
    I, H = input_size, hidden_size
    K = I + H
    Kp = _round_up(K + 1, lane)          # +1 row reserved for the folded bias
    Hp = _round_up(H, lane)
    perm = jnp.array([0, 2, 3, 1])       # [in, cell, forget, out] -> [in, forget, out, cell]

    wt = jnp.take(w.T.reshape(K, 4, H), perm, axis=1)              # (K, 4, H)
    bg = jnp.take(b.reshape(4, H), perm, axis=0)                   # (4, H)
    bg = bg.at[1, :].add(1.0)                                      # fold forget +1.0
    wt = jnp.concatenate([wt, bg[None]], axis=0)                   # (K+1, 4, H)
    wt = jnp.pad(wt, ((0, Kp - (K + 1)), (0, 0), (0, Hp - H)))     # (Kp, 4, Hp)
    return wt.reshape(Kp, 4 * Hp)


def lstm_cell_kernel(xh_ref, cx_ref, wc_ref, hy_ref, cy_ref):
    Hp = cx_ref.shape[1]

    # Single fused MXU matmul over K = I + H (+ bias row), f32 accumulation.
    gates = jnp.dot(xh_ref[...], wc_ref[...], preferred_element_type=jnp.float32)

    # Gate order is [in, forget, out, cell]; forget bias already has +1 folded
    # into the bias row of wc.  One wide sigmoid over a 3*Hp-lane slab, one
    # tanh over Hp lanes; all slices are 128-lane aligned.
    sig = jax.nn.sigmoid(gates[:, : 3 * Hp])
    cellgate = jnp.tanh(gates[:, 3 * Hp:])
    ingate = sig[:, :Hp]
    forgetgate = sig[:, Hp:2 * Hp]
    outgate = sig[:, 2 * Hp:3 * Hp]

    cy = cx_ref[...].astype(jnp.float32) * forgetgate + ingate * cellgate
    hy = outgate * jnp.tanh(cy)

    cy_ref[...] = cy.astype(cy_ref.dtype)
    hy_ref[...] = hy.astype(hy_ref.dtype)


def lstm_cell(x, hx, cx, wc, *, batch_tile=256):
    """x:(B,I)  hx,cx:(B,H)  wc:(Kp,4*Hp) packed  ->  hy,cy:(B,H)."""
    B, I = x.shape
    H = hx.shape[1]
    K = I + H
    Kp, G = wc.shape
    Hp = G // 4

    Bp = _round_up(B, 8)
    TB = min(Bp, batch_tile)
    Bp = _round_up(Bp, TB)

    # Activation packing / padding (fused by XLA around the custom call).
    # Column K carries the constant 1.0 that multiplies the bias row of wc.
    ones = jnp.ones((B, 1), dtype=x.dtype)
    xh = jnp.concatenate([x, hx, ones], axis=1)                    # (B, K+1)
    xh = jnp.pad(xh, ((0, Bp - B), (0, Kp - (K + 1))))             # (Bp, Kp)
    cxp = jnp.pad(cx, ((0, Bp - B), (0, Hp - H)))                  # (Bp, Hp)

    hy, cy = pl.pallas_call(
        lstm_cell_kernel,
        out_shape=(
            jax.ShapeDtypeStruct((Bp, Hp), x.dtype),
            jax.ShapeDtypeStruct((Bp, Hp), cx.dtype),
        ),
        grid=(Bp // TB,),
        in_specs=[
            pl.BlockSpec((TB, Kp), lambda i: (i, 0)),   # xh: pipelined per batch tile
            pl.BlockSpec((TB, Hp), lambda i: (i, 0)),   # cx: pipelined per batch tile
            pl.BlockSpec((Kp, G), lambda i: (0, 0)),    # fused weight+bias: VMEM-resident
        ],
        out_specs=(
            pl.BlockSpec((TB, Hp), lambda i: (i, 0)),
            pl.BlockSpec((TB, Hp), lambda i: (i, 0)),
        ),
        input_output_aliases={1: 1},                    # cx buffer reused for cy
        compiler_params=pltpu.CompilerParams(
            dimension_semantics=("parallel",)),
    )(xh, cxp, wc)

    return hy[:B, :H], cy[:B, :H]


def reference_lstm_cell(x, hx, cx, w, b):
    """Pure-JAX reference mirroring the PyTorch forward exactly."""
    gates = jnp.concatenate([x, hx], axis=1) @ w.T + b
    ingate, cellgate, forgetgate, outgate = jnp.split(gates, 4, axis=1)
    ingate = jax.nn.sigmoid(ingate)
    forgetgate = jax.nn.sigmoid(forgetgate + 1.0)
    cellgate = jnp.tanh(cellgate)
    outgate = jax.nn.sigmoid(outgate)
    cy = cx * forgetgate + ingate * cellgate
    hy = outgate * jnp.tanh(cy)
    return hy, cy


if __name__ == "__main__":
    B, INPUT, HIDDEN = 2, 16, 32

    key = jax.random.PRNGKey(0)
    kx, khx, kcx, kw = jax.random.split(key, 4)

    x = jax.random.normal(kx, (B, INPUT), dtype=jnp.float32)
    hx = jax.random.normal(khx, (B, HIDDEN), dtype=jnp.float32)
    cx = jax.random.normal(kcx, (B, HIDDEN), dtype=jnp.float32)

    # Xavier-uniform init of the (4H, INPUT+H) Linear weight; bias zeros
    # (matches torch.nn.init in the module).
    fan_in, fan_out = INPUT + HIDDEN, 4 * HIDDEN
    limit = float(np.sqrt(6.0 / (fan_in + fan_out)))
    w = jax.random.uniform(kw, (4 * HIDDEN, INPUT + HIDDEN),
                           minval=-limit, maxval=limit, dtype=jnp.float32)
    b = jnp.zeros((4 * HIDDEN,), dtype=jnp.float32)

    # One-time parameter packing (gate permutation, bias fold, lane padding).
    wc = pack_lstm_params(w, b, INPUT, HIDDEN)

    lstm_fn = jax.jit(lstm_cell)
    hy, cy = jax.block_until_ready(lstm_fn(x, hx, cx, wc))
    hy_ref, cy_ref = reference_lstm_cell(x, hx, cx, w, b)

    np.testing.assert_allclose(np.asarray(hy), np.asarray(hy_ref),
                               rtol=1e-5, atol=1e-5)
    np.testing.assert_allclose(np.asarray(cy), np.asarray(cy_ref),
                               rtol=1e-5, atol=1e-5)
    print("KERNEL_OK")
</pallas_src>

<mosaic_0001>
module attributes {stable_mosaic.version = 11 : i64} {
  func.func @lstm_cell_kernel(%arg0: i32, %arg1: memref<8x128xf32, #tpu.memory_space<vmem>>, %arg2: memref<8x128xf32, #tpu.memory_space<vmem>>, %arg3: memref<128x512xf32, #tpu.memory_space<vmem>>, %arg4: memref<8x128xf32, #tpu.memory_space<vmem>>, %arg5: memref<8x128xf32, #tpu.memory_space<vmem>>) attributes {dimension_semantics = [#tpu.dimension_semantics<parallel>], iteration_bounds = array<i64: 1>, scalar_prefetch = 0 : i64, scratch_operands = 0 : i64, tpu.core_type = #tpu.core_type<tc>, window_params = [{transform_indices = @transform_0, window_bounds = array<i64: 8, 128>}, {transform_indices = @transform_1, window_bounds = array<i64: 8, 128>}, {pipeline_mode = #tpu.pipeline_mode<synchronous>, transform_indices = @transform_2, window_bounds = array<i64: 128, 512>}, {transform_indices = @transform_3, window_bounds = array<i64: 8, 128>}, {transform_indices = @transform_4, window_bounds = array<i64: 8, 128>}]} {
    %c0 = arith.constant 0 : index
    %c0_0 = arith.constant 0 : index
    %0 = vector.load %arg1[%c0, %c0_0] : memref<8x128xf32, #tpu.memory_space<vmem>>, vector<8x128xf32>
    %c0_1 = arith.constant 0 : index
    %c0_2 = arith.constant 0 : index
    %1 = vector.load %arg3[%c0_1, %c0_2] : memref<128x512xf32, #tpu.memory_space<vmem>>, vector<128x512xf32>
    %cst = arith.constant dense<0.000000e+00> : vector<8x512xf32>
    %2 = tpu.matmul %0, %1, %cst {dimension_numbers = #tpu.dot_dimension_numbers<[1], [0], [0], [1], [0, 0, 1, 1], [], []>} : vector<8x128xf32>, vector<128x512xf32>, vector<8x512xf32> -> vector<8x512xf32>
    %3 = vector.extract_strided_slice %2 {offsets = [0, 0], sizes = [8, 384], strides = [1, 1]} : vector<8x512xf32> to vector<8x384xf32>
    %4 = arith.negf %3 : vector<8x384xf32>
    %5 = math.exp %4 : vector<8x384xf32>
    %cst_3 = arith.constant 1.000000e+00 : f32
    %6 = vector.broadcast %cst_3 : f32 to vector<8x384xf32>
    %7 = arith.addf %6, %5 : vector<8x384xf32>
    %8 = arith.divf %6, %7 : vector<8x384xf32>
    %9 = vector.extract_strided_slice %2 {offsets = [0, 384], sizes = [8, 128], strides = [1, 1]} : vector<8x512xf32> to vector<8x128xf32>
    %10 = math.tanh %9 : vector<8x128xf32>
    %11 = vector.extract_strided_slice %8 {offsets = [0, 0], sizes = [8, 128], strides = [1, 1]} : vector<8x384xf32> to vector<8x128xf32>
    %12 = vector.extract_strided_slice %8 {offsets = [0, 128], sizes = [8, 128], strides = [1, 1]} : vector<8x384xf32> to vector<8x128xf32>
    %13 = vector.extract_strided_slice %8 {offsets = [0, 256], sizes = [8, 128], strides = [1, 1]} : vector<8x384xf32> to vector<8x128xf32>
    %c0_4 = arith.constant 0 : index
    %c0_5 = arith.constant 0 : index
    %14 = vector.load %arg2[%c0_4, %c0_5] : memref<8x128xf32, #tpu.memory_space<vmem>>, vector<8x128xf32>
    %15 = arith.mulf %14, %12 : vector<8x128xf32>
    %16 = arith.mulf %11, %10 : vector<8x128xf32>
    %17 = arith.addf %15, %16 : vector<8x128xf32>
    %18 = math.tanh %17 : vector<8x128xf32>
    %19 = arith.mulf %13, %18 : vector<8x128xf32>
    %c0_6 = arith.constant 0 : index
    %c0_7 = arith.constant 0 : index
    %20 = vector.load %arg5[%c0_6, %c0_7] : memref<8x128xf32, #tpu.memory_space<vmem>>, vector<8x128xf32>
    tpu.vector_store %arg5[%c0_6, %c0_7], %17 {strides = array<i32>} : memref<8x128xf32, #tpu.memory_space<vmem>>, vector<8x128xf32>,
    %c0_8 = arith.constant 0 : index
    %c0_9 = arith.constant 0 : index
    %21 = vector.load %arg4[%c0_8, %c0_9] : memref<8x128xf32, #tpu.memory_space<vmem>>, vector<8x128xf32>
    tpu.vector_store %arg4[%c0_8, %c0_9], %19 {strides = array<i32>} : memref<8x128xf32, #tpu.memory_space<vmem>>, vector<8x128xf32>,
    return
  }
  func.func @transform_0(%arg0: i32) -> (i32, i32) {
    %c0_i32 = arith.constant 0 : i32
    %c0_i32_0 = arith.constant 0 : i32
    return %arg0, %c0_i32 : i32, i32
  }
  func.func @transform_1(%arg0: i32) -> (i32, i32) {
    %c0_i32 = arith.constant 0 : i32
    %c0_i32_0 = arith.constant 0 : i32
    return %arg0, %c0_i32 : i32, i32
  }
  func.func @transform_2(%arg0: i32) -> (i32, i32) {
    %c0_i32 = arith.constant 0 : i32
    %c0_i32_0 = arith.constant 0 : i32
    %c0_i32_1 = arith.constant 0 : i32
    return %c0_i32, %c0_i32_0 : i32, i32
  }
  func.func @transform_3(%arg0: i32) -> (i32, i32) {
    %c0_i32 = arith.constant 0 : i32
    %c0_i32_0 = arith.constant 0 : i32
    return %arg0, %c0_i32 : i32, i32
  }
  func.func @transform_4(%arg0: i32) -> (i32, i32) {
    %c0_i32 = arith.constant 0 : i32
    %c0_i32_0 = arith.constant 0 : i32
    return %arg0, %c0_i32 : i32, i32
  }
}

</mosaic_0001>

<llo_original>
// kernel: lstm_cell.1
$region0: #{lstm_cell.1}
  #allocation0 [shape = 'u32[]', space=smem, size = 0x4, offset = 0x4, fixed_abs, tag = 'smem constant byte address 0x4 - core index']
  #allocation1 [shape = 'u32[144,128]{1,0:T(1,128)}', space=vmem, size = 0x12000, scoped, tag = 'internal scratch']
  %s0 = inlined_call_operand.vmem [shape: f32[8,128], index: 0, kind: input, shape index: {}]
  %s1 = inlined_call_operand.vmem [shape: f32[8,128], index: 1, kind: input, shape index: {}, may-alias: {1,4}]
  %s2 = inlined_call_operand.hbm [shape: f32[128,512], index: 2, kind: input, shape index: {}]
  %s3 = inlined_call_operand.vmem [shape: f32[8,128], index: 3, kind: output, shape index: {0}]
  %s4 = inlined_call_operand.vmem [shape: f32[8,128], index: 4, kind: output, shape index: {1}, may-alias: {1,4}]
  %5 = xla_tuple %s3, %s4
  %s6 = sld [smem:[#allocation0]]
  $region34: #{lstm_cell.1} parent=0
    _
  %s8 = ssub.s32 1, %s6
  %s9 = scalar_select 0, %s8, %s6
  $region1: #{lstm_cell.1} parent=0
    #allocation2 [shape = 'u8[262144]{0}', space=vmem, size = 0x40000, scoped, tag = 'input window, operand 2, single buffered']
    #allocation3 [shape = 's32[1]{0}', space=sflag, size = 0x4, scoped, tag = 'scoped memory for lstm_cell.1']
    %10 = vsyncpa [#allocation3], 0
    // Predicated region
    $region2: #{lstm_cell.1} parent=1 // pred_check
      _
    $region3: #{lstm_cell.1} parent=1 // pred_check_branch
      %12 = sbr.rel (0) target = $region5
    $region4: #{lstm_cell.1} parent=1 // pred_region
      _
    $region5: #{lstm_cell.1} parent=1 // pred_fallthru
      _
    // Predicated region
    $region6: #{lstm_cell.1} parent=1 // pred_check
      _
    $region7: #{lstm_cell.1} parent=1 // pred_check_branch
      %14 = sbr.rel (0) target = $region9
    $region8: #{lstm_cell.1} parent=1 // pred_region
      _
    $region9: #{lstm_cell.1} parent=1 // pred_fallthru
      _
    // Predicated region
    $region10: #{lstm_cell.1} parent=1 // pred_check
      _
    $region11: #{lstm_cell.1} parent=1 // pred_check_branch
      %16 = sbr.rel (0) target = $region13
    $region12: #{lstm_cell.1} parent=1 // pred_region
      %s18 = ssub.s32 8192, 8192
      %19 = vsyncadd [#allocation3], %s18
      %s20 = sshll.u32 [#allocation2], 4
      %s21 = int_to_ptr.vmem [resolvable:$true] %s20
      %26 = dma.hbm_to_vmem [thread:$0]  %s2, 8192, %s21, [#allocation3], 512, 512, 32
    $region13: #{lstm_cell.1} parent=1 // pred_fallthru
      _
    // Predicated region
    $region14: #{lstm_cell.1} parent=1 // pred_check
      _
    $region15: #{lstm_cell.1} parent=1 // pred_check_branch
      %28 = sbr.rel (0) target = $region17
    $region16: #{lstm_cell.1} parent=1 // pred_region
      %29 = dma.done [#allocation3], 8192
    $region17: #{lstm_cell.1} parent=1 // pred_fallthru
      _
    %v30 = vld [vmem:[%s0] sm:$0xff]
    %v31 = vld [vmem:[#allocation2] sm:$0xff]
    %v32 = vld [vmem:[#allocation2 + $0x8] sm:$0xff]
    %v33 = vld [vmem:[#allocation2 + $0x10] sm:$0xff]
    %v34 = vld [vmem:[#allocation2 + $0x18] sm:$0xff]
    %v35 = vld [vmem:[#allocation2 + $0x20] sm:$0xff]
    %v36 = vld [vmem:[#allocation2 + $0x28] sm:$0xff]
    %v37 = vld [vmem:[#allocation2 + $0x30] sm:$0xff]
    %v38 = vld [vmem:[#allocation2 + $0x38] sm:$0xff]
    %v39 = vld [vmem:[#allocation2 + $0x40] sm:$0xff]
    %v40 = vld [vmem:[#allocation2 + $0x48] sm:$0xff]
    %v41 = vld [vmem:[#allocation2 + $0x50] sm:$0xff]
    %v42 = vld [vmem:[#allocation2 + $0x58] sm:$0xff]
    %v43 = vld [vmem:[#allocation2 + $0x60] sm:$0xff]
    %v44 = vld [vmem:[#allocation2 + $0x68] sm:$0xff]
    %v45 = vld [vmem:[#allocation2 + $0x70] sm:$0xff]
    %v46 = vld [vmem:[#allocation2 + $0x78] sm:$0xff]
    %v47 = vld [vmem:[#allocation2 + $0x80] sm:$0xff]
    %v48 = vld [vmem:[#allocation2 + $0x88] sm:$0xff]
    %v49 = vld [vmem:[#allocation2 + $0x90] sm:$0xff]
    %v50 = vld [vmem:[#allocation2 + $0x98] sm:$0xff]
    %v51 = vld [vmem:[#allocation2 + $0xa0] sm:$0xff]
    %v52 = vld [vmem:[#allocation2 + $0xa8] sm:$0xff]
    %v53 = vld [vmem:[#allocation2 + $0xb0] sm:$0xff]
    %v54 = vld [vmem:[#allocation2 + $0xb8] sm:$0xff]
    %v55 = vld [vmem:[#allocation2 + $0xc0] sm:$0xff]
    %v56 = vld [vmem:[#allocation2 + $0xc8] sm:$0xff]
    %v57 = vld [vmem:[#allocation2 + $0xd0] sm:$0xff]
    %v58 = vld [vmem:[#allocation2 + $0xd8] sm:$0xff]
    %v59 = vld [vmem:[#allocation2 + $0xe0] sm:$0xff]
    %v60 = vld [vmem:[#allocation2 + $0xe8] sm:$0xff]
    %v61 = vld [vmem:[#allocation2 + $0xf0] sm:$0xff]
    %v62 = vld [vmem:[#allocation2 + $0xf8] sm:$0xff]
    %v63 = vld [vmem:[#allocation2 + $0x100] sm:$0xff]
    %v64 = vld [vmem:[#allocation2 + $0x108] sm:$0xff]
    %v65 = vld [vmem:[#allocation2 + $0x110] sm:$0xff]
    %v66 = vld [vmem:[#allocation2 + $0x118] sm:$0xff]
    %v67 = vld [vmem:[#allocation2 + $0x120] sm:$0xff]
    %v68 = vld [vmem:[#allocation2 + $0x128] sm:$0xff]
    %v69 = vld [vmem:[#allocation2 + $0x130] sm:$0xff]
    %v70 = vld [vmem:[#allocation2 + $0x138] sm:$0xff]
    %v71 = vld [vmem:[#allocation2 + $0x140] sm:$0xff]
    %v72 = vld [vmem:[#allocation2 + $0x148] sm:$0xff]
    %v73 = vld [vmem:[#allocation2 + $0x150] sm:$0xff]
    %v74 = vld [vmem:[#allocation2 + $0x158] sm:$0xff]
    %v75 = vld [vmem:[#allocation2 + $0x160] sm:$0xff]
    %v76 = vld [vmem:[#allocation2 + $0x168] sm:$0xff]
    %v77 = vld [vmem:[#allocation2 + $0x170] sm:$0xff]
    %v78 = vld [vmem:[#allocation2 + $0x178] sm:$0xff]
    %v79 = vld [vmem:[#allocation2 + $0x180] sm:$0xff]
    %v80 = vld [vmem:[#allocation2 + $0x188] sm:$0xff]
    %v81 = vld [vmem:[#allocation2 + $0x190] sm:$0xff]
    %v82 = vld [vmem:[#allocation2 + $0x198] sm:$0xff]
    %v83 = vld [vmem:[#allocation2 + $0x1a0] sm:$0xff]
    %v84 = vld [vmem:[#allocation2 + $0x1a8] sm:$0xff]
    %v85 = vld [vmem:[#allocation2 + $0x1b0] sm:$0xff]
    %v86 = vld [vmem:[#allocation2 + $0x1b8] sm:$0xff]
    %v87 = vld [vmem:[#allocation2 + $0x1c0] sm:$0xff]
    %v88 = vld [vmem:[#allocation2 + $0x1c8] sm:$0xff]
    %v89 = vld [vmem:[#allocation2 + $0x1d0] sm:$0xff]
    %v90 = vld [vmem:[#allocation2 + $0x1d8] sm:$0xff]
    %v91 = vld [vmem:[#allocation2 + $0x1e0] sm:$0xff]
    %v92 = vld [vmem:[#allocation2 + $0x1e8] sm:$0xff]
    %v93 = vld [vmem:[#allocation2 + $0x1f0] sm:$0xff]
    %v94 = vld [vmem:[#allocation2 + $0x1f8] sm:$0xff]
    %95 = vmatprep.subr.mxu0 %v32
    %96 = vmatpush1.msra.mxu0 %v31
    %97 = vmatprep.subr.mxu0 %v36
    %98 = vmatpush1.msra.mxu0 %v35
    %99 = vmatprep.subr.mxu0 %v40
    %100 = vmatpush1.msra.mxu0 %v39
    %101 = vmatprep.subr.mxu0 %v44
    %102 = vmatpush1.msra.mxu0 %v43
    %103 = vmatprep.subr.mxu0 %v48
    %104 = vmatpush1.msra.mxu0 %v47
    %105 = vmatprep.subr.mxu0 %v52
    %106 = vmatpush1.msra.mxu0 %v51
    %107 = vmatprep.subr.mxu0 %v56
    %108 = vmatpush1.msra.mxu0 %v55
    %109 = vmatprep.subr.mxu0 %v60
    %110 = vmatpush1.msra.mxu0 %v59
    %111 = vmatprep.subr.mxu0 %v64
    %112 = vmatpush1.msra.mxu0 %v63
    %113 = vmatprep.subr.mxu0 %v68
    %114 = vmatpush1.msra.mxu0 %v67
    %115 = vmatprep.subr.mxu0 %v72
    %116 = vmatpush1.msra.mxu0 %v71
    %117 = vmatprep.subr.mxu0 %v76
    %118 = vmatpush1.msra.mxu0 %v75
    %119 = vmatprep.subr.mxu0 %v80
    %120 = vmatpush1.msra.mxu0 %v79
    %121 = vmatprep.subr.mxu0 %v84
    %122 = vmatpush1.msra.mxu0 %v83
    %123 = vmatprep.subr.mxu0 %v88
    %124 = vmatpush1.msra.mxu0 %v87
    %125 = vmatprep.subr.mxu0 %v92
    %126 = vmatpush1.msra.mxu0 %v91
    %127 = vmatprep.subr.mxu0 0.0
    %128 = vmatpush1.msra.mxu0 0.0
    %129 = vmatprep.subr.mxu0 0.0
    %130 = vmatpush1.msra.mxu0 0.0
    %131 = vmatprep.subr.mxu0 0.0
    %132 = vmatpush1.msra.mxu0 0.0
    %133 = vmatprep.subr.mxu0 0.0
    %134 = vmatpush1.msra.mxu0 0.0
    %135 = vmatprep.subr.mxu0 0.0
    %136 = vmatpush1.msra.mxu0 0.0
    %137 = vmatprep.subr.mxu0 0.0
    %138 = vmatpush1.msra.mxu0 0.0
    %139 = vmatprep.subr.mxu0 0.0
    %140 = vmatpush1.msra.mxu0 0.0
    %141 = vmatprep.subr.mxu0 0.0
    %142 = vmatpush1.msra.mxu0 0.0
    %143 = vmatprep.subr.mxu0 0.0
    %144 = vmatpush1.msra.mxu0 0.0
    %145 = vmatprep.subr.mxu0 0.0
    %146 = vmatpush1.msra.mxu0 0.0
    %147 = vmatprep.subr.mxu0 0.0
    %148 = vmatpush1.msra.mxu0 0.0
    %149 = vmatprep.subr.mxu0 0.0
    %150 = vmatpush1.msra.mxu0 0.0
    %151 = vmatprep.subr.mxu0 0.0
    %152 = vmatpush1.msra.mxu0 0.0
    %153 = vmatprep.subr.mxu0 0.0
    %154 = vmatpush1.msra.mxu0 0.0
    %155 = vmatprep.subr.mxu0 0.0
    %156 = vmatpush1.msra.mxu0 0.0
    %157 = vmatprep.subr.mxu0 0.0
    %158 = vmatpush1.msra.mxu0 0.0
    %159 = vmatprep.mubr.f32.mxu0 0.0
    %160 = vmatmul.mubr.f32.gmra.mrb[0].mxu0 %v30
    %v161 = vpop.f32.mrb[0].mxu0
    %v162 = vadd.f32 0.0, %v161
    %v163 = vpop.f32.mrb[0].mxu0
    %v164 = vadd.f32 0.0, %v163
    %165 = vdwg.mxu0
    %166 = vmatprep.subr.mxu0 %v34
    %167 = vmatpush1.msra.mxu0 %v33
    %168 = vmatprep.subr.mxu0 %v38
    %169 = vmatpush1.msra.mxu0 %v37
    %170 = vmatprep.subr.mxu0 %v42
    %171 = vmatpush1.msra.mxu0 %v41
    %172 = vmatprep.subr.mxu0 %v46
    %173 = vmatpush1.msra.mxu0 %v45
    %174 = vmatprep.subr.mxu0 %v50
    %175 = vmatpush1.msra.mxu0 %v49
    %176 = vmatprep.subr.mxu0 %v54
    %177 = vmatpush1.msra.mxu0 %v53
    %178 = vmatprep.subr.mxu0 %v58
    %179 = vmatpush1.msra.mxu0 %v57
    %180 = vmatprep.subr.mxu0 %v62
    %181 = vmatpush1.msra.mxu0 %v61
    %182 = vmatprep.subr.mxu0 %v66
    %183 = vmatpush1.msra.mxu0 %v65
    %184 = vmatprep.subr.mxu0 %v70
    %185 = vmatpush1.msra.mxu0 %v69
    %186 = vmatprep.subr.mxu0 %v74
    %187 = vmatpush1.msra.mxu0 %v73
    %188 = vmatprep.subr.mxu0 %v78
    %189 = vmatpush1.msra.mxu0 %v77
    %190 = vmatprep.subr.mxu0 %v82
    %191 = vmatpush1.msra.mxu0 %v81
    %192 = vmatprep.subr.mxu0 %v86
    %193 = vmatpush1.msra.mxu0 %v85
    %194 = vmatprep.subr.mxu0 %v90
    %195 = vmatpush1.msra.mxu0 %v89
    %196 = vmatprep.subr.mxu0 %v94
    %197 = vmatpush1.msra.mxu0 %v93
    %198 = vmatprep.subr.mxu0 0.0
    %199 = vmatpush1.msra.mxu0 0.0
    %200 = vmatprep.subr.mxu0 0.0
    %201 = vmatpush1.msra.mxu0 0.0
    %202 = vmatprep.subr.mxu0 0.0
    %203 = vmatpush1.msra.mxu0 0.0
    %204 = vmatprep.subr.mxu0 0.0
    %205 = vmatpush1.msra.mxu0 0.0
    %206 = vmatprep.subr.mxu0 0.0
    %207 = vmatpush1.msra.mxu0 0.0
    %208 = vmatprep.subr.mxu0 0.0
    %209 = vmatpush1.msra.mxu0 0.0
    %210 = vmatprep.subr.mxu0 0.0
    %211 = vmatpush1.msra.mxu0 0.0
    %212 = vmatprep.subr.mxu0 0.0
    %213 = vmatpush1.msra.mxu0 0.0
    %214 = vmatprep.subr.mxu0 0.0
    %215 = vmatpush1.msra.mxu0 0.0
    %216 = vmatprep.subr.mxu0 0.0
    %217 = vmatpush1.msra.mxu0 0.0
    %218 = vmatprep.subr.mxu0 0.0
    %219 = vmatpush1.msra.mxu0 0.0
    %220 = vmatprep.subr.mxu0 0.0
    %221 = vmatpush1.msra.mxu0 0.0
    %222 = vmatprep.subr.mxu0 0.0
    %223 = vmatpush1.msra.mxu0 0.0
    %224 = vmatprep.subr.mxu0 0.0
    %225 = vmatpush1.msra.mxu0 0.0
    %226 = vmatprep.subr.mxu0 0.0
    %227 = vmatpush1.msra.mxu0 0.0
    %228 = vmatprep.subr.mxu0 0.0
    %229 = vmatpush1.msra.mxu0 0.0
    %230 = vmatprep.mubr.f32.mxu0 0.0
    %231 = vmatmul.mubr.f32.gmra.mrb[0].mxu0 %v30
    %v232 = vpop.f32.mrb[0].mxu0
    %v233 = vadd.f32 0.0, %v232
    %v234 = vpop.f32.mrb[0].mxu0
    %v235 = vadd.f32 0.0, %v234
    %236 = vdwg.mxu0
    %v237 = vxor.u32 %v162, 2147483648
    %v238 = vxor.u32 %v164, 2147483648
    %v239 = vxor.u32 %v233, 2147483648
    %v240 = vmul.f32 %v237, 1.442695
    %v241 = vpow.pop %v240
    %v242 = vmul.f32 %v238, 1.442695
    %v243 = vpow.pop %v242
    %v244 = vmul.f32 %v239, 1.442695
    %v245 = vpow.pop %v244
    %v246 = vadd.f32 %v241, 1.0
    %v247 = vadd.f32 %v243, 1.0
    %v248 = vadd.f32 %v245, 1.0
    %v249 = vrcp.pop %v246
    %v250 = vmul.f32 1.0, %v249
    %v251 = vrcp.pop %v247
    %v252 = vmul.f32 1.0, %v251
    %v253 = vrcp.pop %v248
    %v254 = vmul.f32 1.0, %v253
    %v255 = vtanh.pop %v235
    %v256 = vld [vmem:[%s1] sm:$0xff]
    %v257 = vmul.f32 %v256, %v252
    %v258 = vmul.f32 %v250, %v255
    %v259 = vadd.f32 %v257, %v258
    %v260 = vtanh.pop %v259
    %v261 = vmul.f32 %v254, %v260
    %262 = vst [vmem:[%s4] sm:$0xff] %v259
    %263 = vst [vmem:[%s3] sm:$0xff] %v261
    // Predicated region
    $region18: #{lstm_cell.1} parent=1 // pred_check
      _
    $region19: #{lstm_cell.1} parent=1 // pred_check_branch
      %265 = sbr.rel (0) target = $region21
    $region20: #{lstm_cell.1} parent=1 // pred_region
      _
    $region21: #{lstm_cell.1} parent=1 // pred_fallthru
      _
    // Predicated region
    $region22: #{lstm_cell.1} parent=1 // pred_check
      _
    $region23: #{lstm_cell.1} parent=1 // pred_check_branch
      %267 = sbr.rel (0) target = $region25
    $region24: #{lstm_cell.1} parent=1 // pred_region
      _
    $region25: #{lstm_cell.1} parent=1 // pred_fallthru
      _
    // Predicated region
    $region26: #{lstm_cell.1} parent=1 // pred_check
      _
    $region27: #{lstm_cell.1} parent=1 // pred_check_branch
      %269 = sbr.rel (0) target = $region29
    $region28: #{lstm_cell.1} parent=1 // pred_region
      _
    $region29: #{lstm_cell.1} parent=1 // pred_fallthru
      _
    // Predicated region
    $region30: #{lstm_cell.1} parent=1 // pred_check
      _
    $region31: #{lstm_cell.1} parent=1 // pred_check_branch
      %271 = sbr.rel (0) target = $region33
    $region32: #{lstm_cell.1} parent=1 // pred_region
      _
    $region33: #{lstm_cell.1} parent=1 // pred_fallthru
      _
    %272 = vsyncpa [#allocation3], 1

</llo_original>
